<compile_context>
chip_gen: v6e
topology: v6e:2x2x1
jax: 0.10.0
libtpu: 0.0.40
codegen_flags: <defaults>
</compile_context>

<pallas_src>
import jax
import jax.numpy as jnp
import numpy as np
from jax.experimental import pallas as pl


# ----------------------------------------------------------------------------
# Packing layout helpers
# ----------------------------------------------------------------------------
def _round_up(n, m):
    return ((n + m - 1) // m) * m


def _layout(hidden, input_size):
    """Row layout of the packed weight slab (all offsets multiples of 8)."""
    k0 = _round_up(input_size, 8)                 # padded K for the layer-0 x matmul
    r_ih = max(k0, _round_up(hidden, 8))          # rows reserved for W_ih^T per layer
    r = r_ih + hidden + 8                         # per-layer band: W_ih | W_hh | bias(8 rows)
    return k0, r_ih, r


def prepare_params(params, num_layers, hidden, input_size):
    """One-time (outside jit) packing: transpose weights, combine biases, cast to bf16,
    and row-stack everything (incl. the FC head) into a single lane-dense slab."""
    H = hidden
    k0, r_ih, r = _layout(H, input_size)
    rows = num_layers * r + 8                     # + 8-row FC band
    W = np.zeros((rows, 4 * H), np.float32)
    for l in range(num_layers):
        w_ih, w_hh, b_ih, b_hh = (np.asarray(a, np.float32) for a in params[f"layer{l}"])
        base = l * r
        d_in = w_ih.shape[1]
        W[base:base + d_in, :] = w_ih.T                              # (d_in, 4H), zero-padded rows
        W[base + r_ih:base + r_ih + H, :] = w_hh.T                   # (H, 4H)
        W[base + r_ih + H, :] = b_ih + b_hh                          # combined bias row
    fc_w, fc_b = (np.asarray(a, np.float32) for a in params["fc"])
    fc_base = num_layers * r
    W[fc_base, :H] = fc_w.reshape(-1)                                # fc_w lane-dense (1, H)
    W[fc_base + 1, 0] = fc_b.reshape(-1)[0]                          # fc_b scalar
    return jnp.asarray(W, jnp.bfloat16)


# ----------------------------------------------------------------------------
# Fused Pallas kernel: 2 timesteps x num_layers LSTM + Linear head
# ----------------------------------------------------------------------------
def make_fused_lstm_kernel(num_layers, hidden, input_size):
    H = hidden
    four_h = 4 * H
    k0, r_ih, r = _layout(H, input_size)
    fc_base = num_layers * r

    def kernel(x_ref, w_ref, out_ref):
        B = x_ref.shape[0] // 2                   # rows 0:B -> t=0, rows B:2B -> t=1

        # Constant gate-type mask, hoisted once (g lanes get tanh, i/f/o lanes sigmoid).
        lane = jax.lax.broadcasted_iota(jnp.int32, (B, four_h), dimension=1)
        is_g = jnp.logical_and(lane >= 2 * H, lane < 3 * H)

        def activate(gates):                      # gates: (B, 4H) f32, PyTorch order i,f,g,o
            # Single full-vreg EUP tanh; sigmoid(x) = 0.5 * (tanh(x/2) + 1).
            t = jnp.tanh(jnp.where(is_g, gates, gates * 0.5))
            a = jnp.where(is_g, t, t * 0.5 + 0.5)
            return a[:, 0 * H:1 * H], a[:, 1 * H:2 * H], a[:, 2 * H:3 * H], a[:, 3 * H:4 * H]

        xcat = x_ref[...]                         # (2B, k_in) bf16
        h1 = None
        for l in range(num_layers):               # static unroll over layers
            base = l * r
            k_in = k0 if l == 0 else H
            w_ih = w_ref[base:base + k_in, :]                               # (k_in, 4H) bf16
            w_hh = w_ref[base + r_ih:base + r_ih + H, :]                    # (H, 4H)   bf16
            b = w_ref[base + r_ih + H:base + r_ih + H + 1, :].astype(jnp.float32)  # (1, 4H)

            # One batched x-path MXU push for BOTH timesteps.
            gx = jnp.dot(xcat, w_ih, preferred_element_type=jnp.float32)    # (2B, 4H) f32

            # ---- t = 0 : h_prev = c_prev = 0 -> no recurrent matmul, no f*c term
            i0, f0, g0, o0 = activate(gx[0:B, :] + b)
            c0 = i0 * g0
            h0 = o0 * jnp.tanh(c0)

            # ---- t = 1
            rec = jnp.dot(h0.astype(jnp.bfloat16), w_hh,
                          preferred_element_type=jnp.float32)               # (B, 4H) f32
            i1, f1, g1, o1 = activate(gx[B:, :] + rec + b)
            c1 = f1 * c0 + i1 * g1
            h1 = o1 * jnp.tanh(c1)

            # Layer l's (t=0, t=1) outputs feed layer l+1's batched x-path matmul.
            xcat = jnp.concatenate([h0, h1], axis=0).astype(jnp.bfloat16)   # (2B, H)

        # FC head on out[:, 1, :]: VPU multiply + XLU lane reduce (skip an N=1 MXU push).
        fcw = w_ref[fc_base:fc_base + 1, 0:H].astype(jnp.float32)           # (1, H)
        fcb = w_ref[fc_base + 1:fc_base + 2, 0:1].astype(jnp.float32)       # (1, 1)
        out_ref[...] = jnp.sum(h1 * fcw, axis=-1, keepdims=True) + fcb

    return kernel


# ----------------------------------------------------------------------------
# Wrapper
# ----------------------------------------------------------------------------
def make_lstm_forward(num_layers, hidden, input_size):
    k0, _, _ = _layout(hidden, input_size)
    kernel = make_fused_lstm_kernel(num_layers, hidden, input_size)

    @jax.jit
    def forward(x_bsd, w_packed):
        """x_bsd: (batch, seq >= 2, input_size) f32 -> (batch, 1) f32."""
        B, S, D = x_bsd.shape
        assert S >= 2, "module consumes out[:, 1, :] -> seq_len must be >= 2"

        # Only timesteps 0 and 1 contribute to out[:, 1, :] (exact truncation).
        x01 = jnp.concatenate([x_bsd[:, 0, :], x_bsd[:, 1, :]], axis=0)     # (2B, D)
        if D < k0:
            x01 = jnp.pad(x01, ((0, 0), (0, k0 - D)))                       # lane pad to K0
        x_slab = x01.astype(jnp.bfloat16)

        return pl.pallas_call(
            kernel,
            out_shape=jax.ShapeDtypeStruct((B, 1), jnp.float32),
            # grid=(): single invocation, whole (tiny) operands resident in VMEM.
            in_specs=[
                pl.BlockSpec(x_slab.shape, lambda: (0, 0)),
                pl.BlockSpec(w_packed.shape, lambda: (0, 0)),
            ],
            out_specs=pl.BlockSpec((B, 1), lambda: (0, 0)),
        )(x_slab, w_packed)

    return forward


# ----------------------------------------------------------------------------
# Pure-JAX reference (full-sequence scan, for verification)
# ----------------------------------------------------------------------------
def lstm_forward_ref(x_bsd, params, num_layers):
    B = x_bsd.shape[0]
    cur = x_bsd
    for l in range(num_layers):
        w_ih, w_hh, b_ih, b_hh = params[f"layer{l}"]
        H = w_hh.shape[1]
        h = jnp.zeros((B, H), jnp.float32)
        c = jnp.zeros((B, H), jnp.float32)

        def step(carry, x_t):
            h, c = carry
            gates = x_t @ w_ih.T + b_ih + h @ w_hh.T + b_hh
            i = jax.nn.sigmoid(gates[:, 0 * H:1 * H])
            f = jax.nn.sigmoid(gates[:, 1 * H:2 * H])
            g = jnp.tanh(gates[:, 2 * H:3 * H])
            o = jax.nn.sigmoid(gates[:, 3 * H:4 * H])
            c = f * c + i * g
            h = o * jnp.tanh(c)
            return (h, c), h

        (_, _), hs = jax.lax.scan(step, (h, c), jnp.transpose(cur, (1, 0, 2)))
        cur = jnp.transpose(hs, (1, 0, 2))
    fc_w, fc_b = params["fc"]
    return cur[:, 1, :] @ fc_w.T + fc_b


# ----------------------------------------------------------------------------
# Main
# ----------------------------------------------------------------------------
if __name__ == "__main__":
    # Small, TPU-friendly shapes consistent with the module's forward.
    batch, seq, input_size, hidden, num_layers = 8, 8, 4, 32, 2

    key = jax.random.PRNGKey(0)
    keys = jax.random.split(key, 4 * num_layers + 3)

    # Deterministic parameter init (PyTorch nn.LSTM shapes, gate order i, f, g, o).
    params = {}
    k = 0
    bound = 1.0 / np.sqrt(hidden)
    for l in range(num_layers):
        d_in = input_size if l == 0 else hidden
        w_ih = jax.random.uniform(keys[k], (4 * hidden, d_in), jnp.float32, -bound, bound); k += 1
        w_hh = jax.random.uniform(keys[k], (4 * hidden, hidden), jnp.float32, -bound, bound); k += 1
        b_ih = jax.random.uniform(keys[k], (4 * hidden,), jnp.float32, -bound, bound); k += 1
        b_hh = jax.random.uniform(keys[k], (4 * hidden,), jnp.float32, -bound, bound); k += 1
        params[f"layer{l}"] = (w_ih, w_hh, b_ih, b_hh)
    fc_w = jax.random.uniform(keys[k], (1, hidden), jnp.float32, -bound, bound); k += 1
    fc_b = jax.random.uniform(keys[k], (1,), jnp.float32, -bound, bound); k += 1
    params["fc"] = (fc_w, fc_b)

    x = jax.random.normal(keys[k], (batch, seq, input_size), jnp.float32)

    # One-time weight packing (outside jit): single bf16 slab for all layers + FC head.
    w_packed = prepare_params(params, num_layers, hidden, input_size)
    forward = make_lstm_forward(num_layers, hidden, input_size)

    y = jax.block_until_ready(forward(x, w_packed))
    assert y.shape == (batch, 1), y.shape

    y_ref = jax.block_until_ready(lstm_forward_ref(x, params, num_layers))
    # Kernel uses bf16 weight storage + default (bf16-pass) MXU precision; tolerance
    # accounts for bf16 operand rounding relative to the reference path.
    np.testing.assert_allclose(np.asarray(y), np.asarray(y_ref), rtol=5e-3, atol=5e-3)

    print("KERNEL_OK")
</pallas_src>

<mosaic_0001>
module attributes {stable_mosaic.version = 11 : i64} {
  func.func @kernel(%arg0: memref<16x8xbf16, #tpu.memory_space<vmem>>, %arg1: memref<152x128xbf16, #tpu.memory_space<vmem>>, %arg2: memref<8x1xf32, #tpu.memory_space<vmem>>) attributes {dimension_semantics = [], scalar_prefetch = 0 : i64, scratch_operands = 0 : i64, tpu.core_type = #tpu.core_type<tc>} {
    %0 = tpu.iota {dimensions = array<i32: 1>} : vector<8x128xi32>
    %c64_i32 = arith.constant 64 : i32
    %1 = vector.broadcast %c64_i32 : i32 to vector<8x128xi32>
    %2 = arith.cmpi sge, %0, %1 : vector<8x128xi32>
    %c96_i32 = arith.constant 96 : i32
    %3 = vector.broadcast %c96_i32 : i32 to vector<8x128xi32>
    %4 = arith.cmpi slt, %0, %3 : vector<8x128xi32>
    %5 = arith.andi %2, %4 : vector<8x128xi1>
    %c0 = arith.constant 0 : index
    %c0_0 = arith.constant 0 : index
    %6 = vector.load %arg0[%c0, %c0_0] : memref<16x8xbf16, #tpu.memory_space<vmem>>, vector<16x8xbf16>
    %c0_1 = arith.constant 0 : index
    %c0_2 = arith.constant 0 : index
    %7 = vector.load %arg1[%c0_1, %c0_2] : memref<152x128xbf16, #tpu.memory_space<vmem>>, vector<8x128xbf16>
    %c32 = arith.constant 32 : index
    %c0_3 = arith.constant 0 : index
    %8 = vector.load %arg1[%c32, %c0_3] : memref<152x128xbf16, #tpu.memory_space<vmem>>, vector<32x128xbf16>
    %c64 = arith.constant 64 : index
    %c0_4 = arith.constant 0 : index
    %9 = vector.load %arg1[%c64, %c0_4] : memref<152x128xbf16, #tpu.memory_space<vmem>>, vector<1x128xbf16>
    %10 = arith.extf %9 : vector<1x128xbf16> to vector<1x128xf32>
    %cst = arith.constant dense<0.000000e+00> : vector<16x128xf32>
    %11 = tpu.matmul %6, %7, %cst {dimension_numbers = #tpu.dot_dimension_numbers<[1], [0], [0], [1], [0, 0, 1, 1], [], []>} : vector<16x8xbf16>, vector<8x128xbf16>, vector<16x128xf32> -> vector<16x128xf32>
    %12 = vector.extract_strided_slice %11 {offsets = [0, 0], sizes = [8, 128], strides = [1, 1]} : vector<16x128xf32> to vector<8x128xf32>
    %13 = vector.broadcast %10 : vector<1x128xf32> to vector<8x128xf32>
    %14 = arith.addf %12, %13 : vector<8x128xf32>
    %cst_5 = arith.constant 5.000000e-01 : f32
    %15 = vector.broadcast %cst_5 : f32 to vector<8x128xf32>
    %16 = arith.mulf %14, %15 : vector<8x128xf32>
    %17 = arith.select %5, %14, %16 : vector<8x128xi1>, vector<8x128xf32>
    %18 = math.tanh %17 : vector<8x128xf32>
    %cst_6 = arith.constant 5.000000e-01 : f32
    %19 = vector.broadcast %cst_6 : f32 to vector<8x128xf32>
    %20 = arith.mulf %18, %19 : vector<8x128xf32>
    %cst_7 = arith.constant 5.000000e-01 : f32
    %21 = vector.broadcast %cst_7 : f32 to vector<8x128xf32>
    %22 = arith.addf %20, %21 : vector<8x128xf32>
    %23 = arith.select %5, %18, %22 : vector<8x128xi1>, vector<8x128xf32>
    %24 = vector.extract_strided_slice %23 {offsets = [0, 0], sizes = [8, 32], strides = [1, 1]} : vector<8x128xf32> to vector<8x32xf32>
    %25 = vector.extract_strided_slice %23 {offsets = [0, 64], sizes = [8, 32], strides = [1, 1]} : vector<8x128xf32> to vector<8x32xf32>
    %26 = vector.extract_strided_slice %23 {offsets = [0, 96], sizes = [8, 32], strides = [1, 1]} : vector<8x128xf32> to vector<8x32xf32>
    %27 = arith.mulf %24, %25 : vector<8x32xf32>
    %28 = math.tanh %27 : vector<8x32xf32>
    %29 = arith.mulf %26, %28 : vector<8x32xf32>
    %30 = arith.truncf %29 : vector<8x32xf32> to vector<8x32xbf16>
    %cst_8 = arith.constant dense<0.000000e+00> : vector<8x128xf32>
    %31 = tpu.matmul %30, %8, %cst_8 {dimension_numbers = #tpu.dot_dimension_numbers<[1], [0], [0], [1], [0, 0, 1, 1], [], []>} : vector<8x32xbf16>, vector<32x128xbf16>, vector<8x128xf32> -> vector<8x128xf32>
    %32 = vector.extract_strided_slice %11 {offsets = [8, 0], sizes = [8, 128], strides = [1, 1]} : vector<16x128xf32> to vector<8x128xf32>
    %33 = arith.addf %32, %31 : vector<8x128xf32>
    %34 = vector.broadcast %10 : vector<1x128xf32> to vector<8x128xf32>
    %35 = arith.addf %33, %34 : vector<8x128xf32>
    %cst_9 = arith.constant 5.000000e-01 : f32
    %36 = vector.broadcast %cst_9 : f32 to vector<8x128xf32>
    %37 = arith.mulf %35, %36 : vector<8x128xf32>
    %38 = arith.select %5, %35, %37 : vector<8x128xi1>, vector<8x128xf32>
    %39 = math.tanh %38 : vector<8x128xf32>
    %cst_10 = arith.constant 5.000000e-01 : f32
    %40 = vector.broadcast %cst_10 : f32 to vector<8x128xf32>
    %41 = arith.mulf %39, %40 : vector<8x128xf32>
    %cst_11 = arith.constant 5.000000e-01 : f32
    %42 = vector.broadcast %cst_11 : f32 to vector<8x128xf32>
    %43 = arith.addf %41, %42 : vector<8x128xf32>
    %44 = arith.select %5, %39, %43 : vector<8x128xi1>, vector<8x128xf32>
    %45 = vector.extract_strided_slice %44 {offsets = [0, 0], sizes = [8, 32], strides = [1, 1]} : vector<8x128xf32> to vector<8x32xf32>
    %46 = vector.extract_strided_slice %44 {offsets = [0, 32], sizes = [8, 32], strides = [1, 1]} : vector<8x128xf32> to vector<8x32xf32>
    %47 = vector.extract_strided_slice %44 {offsets = [0, 64], sizes = [8, 32], strides = [1, 1]} : vector<8x128xf32> to vector<8x32xf32>
    %48 = vector.extract_strided_slice %44 {offsets = [0, 96], sizes = [8, 32], strides = [1, 1]} : vector<8x128xf32> to vector<8x32xf32>
    %49 = arith.mulf %46, %27 : vector<8x32xf32>
    %50 = arith.mulf %45, %47 : vector<8x32xf32>
    %51 = arith.addf %49, %50 : vector<8x32xf32>
    %52 = math.tanh %51 : vector<8x32xf32>
    %53 = arith.mulf %48, %52 : vector<8x32xf32>
    %54 = tpu.concatenate %29, %53 in 0 : vector<8x32xf32>, vector<8x32xf32> -> vector<16x32xf32>
    %55 = arith.truncf %54 : vector<16x32xf32> to vector<16x32xbf16>
    %c72 = arith.constant 72 : index
    %c0_12 = arith.constant 0 : index
    %56 = vector.load %arg1[%c72, %c0_12] : memref<152x128xbf16, #tpu.memory_space<vmem>>, vector<32x128xbf16>
    %c104 = arith.constant 104 : index
    %c0_13 = arith.constant 0 : index
    %57 = vector.load %arg1[%c104, %c0_13] : memref<152x128xbf16, #tpu.memory_space<vmem>>, vector<32x128xbf16>
    %c136 = arith.constant 136 : index
    %c0_14 = arith.constant 0 : index
    %58 = vector.load %arg1[%c136, %c0_14] : memref<152x128xbf16, #tpu.memory_space<vmem>>, vector<1x128xbf16>
    %59 = arith.extf %58 : vector<1x128xbf16> to vector<1x128xf32>
    %cst_15 = arith.constant dense<0.000000e+00> : vector<16x128xf32>
    %60 = tpu.matmul %55, %56, %cst_15 {dimension_numbers = #tpu.dot_dimension_numbers<[1], [0], [0], [1], [0, 0, 1, 1], [], []>} : vector<16x32xbf16>, vector<32x128xbf16>, vector<16x128xf32> -> vector<16x128xf32>
    %61 = vector.extract_strided_slice %60 {offsets = [0, 0], sizes = [8, 128], strides = [1, 1]} : vector<16x128xf32> to vector<8x128xf32>
    %62 = vector.broadcast %59 : vector<1x128xf32> to vector<8x128xf32>
    %63 = arith.addf %61, %62 : vector<8x128xf32>
    %cst_16 = arith.constant 5.000000e-01 : f32
    %64 = vector.broadcast %cst_16 : f32 to vector<8x128xf32>
    %65 = arith.mulf %63, %64 : vector<8x128xf32>
    %66 = arith.select %5, %63, %65 : vector<8x128xi1>, vector<8x128xf32>
    %67 = math.tanh %66 : vector<8x128xf32>
    %cst_17 = arith.constant 5.000000e-01 : f32
    %68 = vector.broadcast %cst_17 : f32 to vector<8x128xf32>
    %69 = arith.mulf %67, %68 : vector<8x128xf32>
    %cst_18 = arith.constant 5.000000e-01 : f32
    %70 = vector.broadcast %cst_18 : f32 to vector<8x128xf32>
    %71 = arith.addf %69, %70 : vector<8x128xf32>
    %72 = arith.select %5, %67, %71 : vector<8x128xi1>, vector<8x128xf32>
    %73 = vector.extract_strided_slice %72 {offsets = [0, 0], sizes = [8, 32], strides = [1, 1]} : vector<8x128xf32> to vector<8x32xf32>
    %74 = vector.extract_strided_slice %72 {offsets = [0, 64], sizes = [8, 32], strides = [1, 1]} : vector<8x128xf32> to vector<8x32xf32>
    %75 = vector.extract_strided_slice %72 {offsets = [0, 96], sizes = [8, 32], strides = [1, 1]} : vector<8x128xf32> to vector<8x32xf32>
    %76 = arith.mulf %73, %74 : vector<8x32xf32>
    %77 = math.tanh %76 : vector<8x32xf32>
    %78 = arith.mulf %75, %77 : vector<8x32xf32>
    %79 = arith.truncf %78 : vector<8x32xf32> to vector<8x32xbf16>
    %cst_19 = arith.constant dense<0.000000e+00> : vector<8x128xf32>
    %80 = tpu.matmul %79, %57, %cst_19 {dimension_numbers = #tpu.dot_dimension_numbers<[1], [0], [0], [1], [0, 0, 1, 1], [], []>} : vector<8x32xbf16>, vector<32x128xbf16>, vector<8x128xf32> -> vector<8x128xf32>
    %81 = vector.extract_strided_slice %60 {offsets = [8, 0], sizes = [8, 128], strides = [1, 1]} : vector<16x128xf32> to vector<8x128xf32>
    %82 = arith.addf %81, %80 : vector<8x128xf32>
    %83 = vector.broadcast %59 : vector<1x128xf32> to vector<8x128xf32>
    %84 = arith.addf %82, %83 : vector<8x128xf32>
    %cst_20 = arith.constant 5.000000e-01 : f32
    %85 = vector.broadcast %cst_20 : f32 to vector<8x128xf32>
    %86 = arith.mulf %84, %85 : vector<8x128xf32>
    %87 = arith.select %5, %84, %86 : vector<8x128xi1>, vector<8x128xf32>
    %88 = math.tanh %87 : vector<8x128xf32>
    %cst_21 = arith.constant 5.000000e-01 : f32
    %89 = vector.broadcast %cst_21 : f32 to vector<8x128xf32>
    %90 = arith.mulf %88, %89 : vector<8x128xf32>
    %cst_22 = arith.constant 5.000000e-01 : f32
    %91 = vector.broadcast %cst_22 : f32 to vector<8x128xf32>
    %92 = arith.addf %90, %91 : vector<8x128xf32>
    %93 = arith.select %5, %88, %92 : vector<8x128xi1>, vector<8x128xf32>
    %94 = vector.extract_strided_slice %93 {offsets = [0, 0], sizes = [8, 32], strides = [1, 1]} : vector<8x128xf32> to vector<8x32xf32>
    %95 = vector.extract_strided_slice %93 {offsets = [0, 32], sizes = [8, 32], strides = [1, 1]} : vector<8x128xf32> to vector<8x32xf32>
    %96 = vector.extract_strided_slice %93 {offsets = [0, 64], sizes = [8, 32], strides = [1, 1]} : vector<8x128xf32> to vector<8x32xf32>
    %97 = vector.extract_strided_slice %93 {offsets = [0, 96], sizes = [8, 32], strides = [1, 1]} : vector<8x128xf32> to vector<8x32xf32>
    %98 = arith.mulf %95, %76 : vector<8x32xf32>
    %99 = arith.mulf %94, %96 : vector<8x32xf32>
    %100 = arith.addf %98, %99 : vector<8x32xf32>
    %101 = math.tanh %100 : vector<8x32xf32>
    %102 = arith.mulf %97, %101 : vector<8x32xf32>
    %c144 = arith.constant 144 : index
    %c0_23 = arith.constant 0 : index
    %103 = vector.load %arg1[%c144, %c0_23] : memref<152x128xbf16, #tpu.memory_space<vmem>>, vector<1x32xbf16>
    %104 = arith.extf %103 : vector<1x32xbf16> to vector<1x32xf32>
    %c145 = arith.constant 145 : index
    %c0_24 = arith.constant 0 : index
    %105 = vector.load %arg1[%c145, %c0_24] : memref<152x128xbf16, #tpu.memory_space<vmem>>, vector<1x1xbf16>
    %106 = arith.extf %105 : vector<1x1xbf16> to vector<1x1xf32>
    %107 = vector.broadcast %104 : vector<1x32xf32> to vector<8x32xf32>
    %108 = arith.mulf %102, %107 : vector<8x32xf32>
    %cst_25 = arith.constant dense<0.000000e+00> : vector<8xf32>
    %109 = vector.multi_reduction <add>, %108, %cst_25 [1] : vector<8x32xf32> to vector<8xf32>
    %110 = vector.shape_cast %109 : vector<8xf32> to vector<8x1xf32>
    %111 = vector.broadcast %106 : vector<1x1xf32> to vector<8x1xf32>
    %112 = arith.addf %110, %111 : vector<8x1xf32>
    %c0_26 = arith.constant 0 : index
    %c0_27 = arith.constant 0 : index
    %113 = vector.load %arg2[%c0_26, %c0_27] : memref<8x1xf32, #tpu.memory_space<vmem>>, vector<8x1xf32>
    tpu.vector_store %arg2[%c0_26, %c0_27], %112 {strides = array<i32>} : memref<8x1xf32, #tpu.memory_space<vmem>>, vector<8x1xf32>,
    return
  }
}

</mosaic_0001>

<llo_original>
// kernel: forward.1
$region0: #{forward.1}
  #allocation0 [shape = 'u32[]', space=smem, size = 0x4, offset = 0x4, fixed_abs, tag = 'smem constant byte address 0x4 - core index']
  #allocation1 [shape = 'u32[144,128]{1,0:T(1,128)}', space=vmem, size = 0x12000, scoped, tag = 'internal scratch']
  %s0 = inlined_call_operand.vmem [shape: bf16[16,8], index: 0, kind: input, shape index: {}]
  %s1 = inlined_call_operand.vmem [shape: bf16[152,128], index: 1, kind: input, shape index: {}]
  %s2 = inlined_call_operand.vmem [shape: f32[8,1], index: 2, kind: output, shape index: {}]
  %s3 = sld [smem:[#allocation0]]
  $region18: #{forward.1} parent=0
    _
  %s5 = ssub.s32 1, %s3
  %s6 = scalar_select 0, %s5, %s3
  // Predicated region
  $region2: #{forward.1} parent=0 // pred_check
    _
  $region3: #{forward.1} parent=0 // pred_check_branch
    %8 = sbr.rel (0) target = $region5
  $region4: #{forward.1} parent=0 // pred_region
    _
  $region5: #{forward.1} parent=0 // pred_fallthru
    _
  // Predicated region
  $region6: #{forward.1} parent=0 // pred_check
    _
  $region7: #{forward.1} parent=0 // pred_check_branch
    %10 = sbr.rel (0) target = $region9
  $region8: #{forward.1} parent=0 // pred_region
    _
  $region9: #{forward.1} parent=0 // pred_fallthru
    _
  %v12 = vlaneseq
  %v13 = vand.u32 %v12, 127
  %vm14 = vcmp.ge.s32.totalorder %v13, 64
  %vm15 = vcmp.lt.s32.totalorder %v13, 96
  %vm16 = vmand %vm14, %vm15
  %v17 = vld [vmem:[%s0] sm:$0xf]
  %v18 = vld [vmem:[%s0 + $0x4] sm:$0xf]
  %v19 = vld [vmem:[%s1] sm:$0xf]
  %v20 = vld [vmem:[%s1 + $0x10] sm:$0xf]
  %v21 = vld [vmem:[%s1 + $0x14] sm:$0xf]
  %v22 = vld [vmem:[%s1 + $0x18] sm:$0xf]
  %v23 = vld [vmem:[%s1 + $0x1c] sm:$0xf]
  %v24 = vld [vmem:[%s1 + $0x20] sm:$0x1]
  %v25 = vunpack.c.l.bf16 %v24
  %v28 = vunpack.c.l.b16 %v17
  %v29 = vunpack.c.l.b16 %v18
  %v30 = vpack.c.b16 %v29, %v28
  %vm31 = vcmask 64512
  %v33 = vsel %vm31, %v30, 0
  %vm35 = vcmask 1043456
  %v37 = vsel %vm35, %v19, 0
  %39 = vmatprep.subr.bf16.mxu0 0
  %40 = vmatpush1.bf16.msra.mxu0 0
  %41 = vmatprep.subr.bf16.mxu0 0
  %42 = vmatpush1.bf16.msra.mxu0 0
  %43 = vmatprep.subr.bf16.mxu0 0
  %44 = vmatpush1.bf16.msra.mxu0 0
  %45 = vmatprep.subr.bf16.mxu0 0
  %46 = vmatpush1.bf16.msra.mxu0 0
  %47 = vmatprep.subr.bf16.mxu0 0
  %48 = vmatpush1.bf16.msra.mxu0 0
  %49 = vmatprep.subr.bf16.mxu0 0
  %50 = vmatpush1.bf16.msra.mxu0 0
  %51 = vmatprep.subr.bf16.mxu0 0
  %52 = vmatpush1.bf16.msra.mxu0 0
  %53 = vmatprep.subr.bf16.mxu0 0
  %54 = vmatpush1.bf16.msra.mxu0 %v37
  %55 = vmatprep.subr.bf16.mxu0 0
  %56 = vmatpush2.bf16.msra.mxu0 0
  %57 = vmatprep.subr.bf16.mxu0 0
  %58 = vmatpush2.bf16.msra.mxu0 0
  %59 = vmatprep.subr.bf16.mxu0 0
  %60 = vmatpush2.bf16.msra.mxu0 0
  %61 = vmatprep.subr.bf16.mxu0 0
  %62 = vmatpush2.bf16.msra.mxu0 0
  %63 = vmatprep.subr.bf16.mxu0 0
  %64 = vmatpush2.bf16.msra.mxu0 0
  %65 = vmatprep.subr.bf16.mxu0 0
  %66 = vmatpush2.bf16.msra.mxu0 0
  %67 = vmatprep.subr.bf16.mxu0 0
  %68 = vmatpush2.bf16.msra.mxu0 0
  %69 = vmatprep.subr.bf16.mxu0 0
  %70 = vmatpush2.bf16.msra.mxu0 0
  %71 = vmatprep.mubr.bf16.mxu0 0
  %72 = vmatmul.mubr.bf16.gmra.mxu0 %v33
  %v73 = vpop.f32.mrf.mxu0
  %v74 = vadd.f32 0.0, %v73
  %v75 = vpop.f32.mrf.mxu0
  %v76 = vpop.f32.mrf.mxu0
  %v77 = vadd.f32 0.0, %v76
  %v78 = vpop.f32.mrf.mxu0
  %79 = vdwg.mxu0
  %v80 = vlaneseq
  %v81 = vshrl.u32 %v80, 7
  %v82 = vsub.s32 0, %v81
  %v83 = vrot.slane %v25, %v82
  %v84 = vadd.f32 %v74, %v83
  %v85 = vmul.f32 %v84, 0.5
  %v86 = vsel %vm16, %v84, %v85
  %v87 = vtanh.pop %v86
  %v88 = vmul.f32 %v87, 0.5
  %v89 = vadd.f32 %v88, 0.5
  %v90 = vsel %vm16, %v87, %v89
  %92 = vrot.lane.b32.xlu0 %v90, 64
  %v93 = vpop.permute.xlu0 %92
  %v95 = vmul.f32 %v90, %v93
  %v96 = vtanh.pop %v95
  %98 = vrot.lane.b32.xlu0 %v96, 96
  %v99 = vpop.permute.xlu0 %98
  %v101 = vmul.f32 %v90, %v99
  %v102 = vpack.c.bf16 %v101, %v101
  %104 = vrot.lane.b32.xlu0 %v102, 32
  %v105 = vpop.permute.xlu0 %104
  %v110 = vunpack.c.l.b16 %v20
  %v111 = vunpack.c.l.b16 %v21
  %v112 = vunpack.c.l.b16 %v22
  %v113 = vunpack.c.l.b16 %v23
  %v114 = vpack.c.b16 %v111, %v110
  %v115 = vpack.c.b16 %v113, %v112
  %vm118 = vcmask 261120
  %v120 = vsel %vm118, %v105, 0
  %122 = vmatprep.subr.bf16.mxu0 0
  %123 = vmatpush1.bf16.msra.mxu0 0
  %124 = vmatprep.subr.bf16.mxu0 0
  %125 = vmatpush1.bf16.msra.mxu0 0
  %126 = vmatprep.subr.bf16.mxu0 0
  %127 = vmatpush1.bf16.msra.mxu0 0
  %128 = vmatprep.subr.bf16.mxu0 0
  %129 = vmatpush1.bf16.msra.mxu0 0
  %130 = vmatprep.subr.bf16.mxu0 0
  %131 = vmatpush1.bf16.msra.mxu0 0
  %132 = vmatprep.subr.bf16.mxu0 0
  %133 = vmatpush1.bf16.msra.mxu0 0
  %134 = vmatprep.subr.bf16.mxu0 0
  %135 = vmatpush1.bf16.msra.mxu0 %v115
  %136 = vmatprep.subr.bf16.mxu0 0
  %137 = vmatpush1.bf16.msra.mxu0 %v114
  %138 = vmatprep.subr.bf16.mxu0 0
  %139 = vmatpush2.bf16.msra.mxu0 0
  %140 = vmatprep.subr.bf16.mxu0 0
  %141 = vmatpush2.bf16.msra.mxu0 0
  %142 = vmatprep.subr.bf16.mxu0 0
  %143 = vmatpush2.bf16.msra.mxu0 0
  %144 = vmatprep.subr.bf16.mxu0 0
  %145 = vmatpush2.bf16.msra.mxu0 0
  %146 = vmatprep.subr.bf16.mxu0 0
  %147 = vmatpush2.bf16.msra.mxu0 0
  %148 = vmatprep.subr.bf16.mxu0 0
  %149 = vmatpush2.bf16.msra.mxu0 0
  %150 = vmatprep.subr.bf16.mxu0 0
  %151 = vmatpush2.bf16.msra.mxu0 0
  %152 = vmatprep.subr.bf16.mxu0 0
  %153 = vmatpush2.bf16.msra.mxu0 0
  %154 = vmatprep.mubr.bf16.mxu0 0
  %155 = vmatmul.mubr.bf16.gmra.mxu0 %v120
  %v156 = vpop.f32.mrf.mxu0
  %v157 = vadd.f32 0.0, %v156
  %v158 = vpop.f32.mrf.mxu0
  %v159 = vpop.f32.mrf.mxu0
  %v160 = vpop.f32.mrf.mxu0
  %161 = vdwg.mxu0
  %v162 = vadd.f32 %v77, %v157
  %v163 = vadd.f32 %v162, %v83
  %v164 = vmul.f32 %v163, 0.5
  %v165 = vsel %vm16, %v163, %v164
  %v166 = vtanh.pop %v165
  %v167 = vmul.f32 %v166, 0.5
  %v168 = vadd.f32 %v167, 0.5
  %v169 = vsel %vm16, %v166, %v168
  %171 = vrot.lane.b32.xlu0 %v95, 32
  %v172 = vpop.permute.xlu0 %171
  %v174 = vmul.f32 %v169, %v172
  %176 = vrot.lane.b32.xlu0 %v169, 64
  %v177 = vpop.permute.xlu0 %176
  %v179 = vmul.f32 %v169, %v177
  %181 = vrot.lane.b32.xlu0 %v179, 32
  %v182 = vpop.permute.xlu0 %181
  %v184 = vadd.f32 %v174, %v182
  %v185 = vtanh.pop %v184
  %187 = vrot.lane.b32.xlu0 %v185, 64
  %v188 = vpop.permute.xlu0 %187
  %v190 = vmul.f32 %v169, %v188
  %v191 = vpack.c.bf16 %v190, %v101
  %v192 = vld [vmem:[%s1 + $0x24] sm:$0xf]
  %v193 = vld [vmem:[%s1 + $0x28] sm:$0xf]
  %v194 = vld [vmem:[%s1 + $0x2c] sm:$0xf]
  %v195 = vld [vmem:[%s1 + $0x30] sm:$0xf]
  %v196 = vld [vmem:[%s1 + $0x34] sm:$0xf]
  %v197 = vld [vmem:[%s1 + $0x38] sm:$0xf]
  %v198 = vld [vmem:[%s1 + $0x3c] sm:$0xf]
  %v199 = vld [vmem:[%s1 + $0x40] sm:$0xf]
  %v200 = vld [vmem:[%s1 + $0x44] sm:$0x1]
  %v201 = vunpack.c.l.bf16 %v200
  %203 = vrot.lane.b32.xlu0 %v191, 32
  %v204 = vpop.permute.xlu0 %203
  %v209 = vunpack.c.l.b16 %v192
  %v210 = vunpack.c.l.b16 %v193
  %v211 = vunpack.c.l.b16 %v194
  %v212 = vunpack.c.l.b16 %v195
  %v213 = vpack.c.b16 %v210, %v209
  %v214 = vpack.c.b16 %v212, %v211
  %v218 = vsel %vm118, %v204, 0
  %220 = vmatprep.subr.bf16.mxu0 0
  %221 = vmatpush1.bf16.msra.mxu0 0
  %222 = vmatprep.subr.bf16.mxu0 0
  %223 = vmatpush1.bf16.msra.mxu0 0
  %224 = vmatprep.subr.bf16.mxu0 0
  %225 = vmatpush1.bf16.msra.mxu0 0
  %226 = vmatprep.subr.bf16.mxu0 0
  %227 = vmatpush1.bf16.msra.mxu0 0
  %228 = vmatprep.subr.bf16.mxu0 0
  %229 = vmatpush1.bf16.msra.mxu0 0
  %230 = vmatprep.subr.bf16.mxu0 0
  %231 = vmatpush1.bf16.msra.mxu0 0
  %232 = vmatprep.subr.bf16.mxu0 0
  %233 = vmatpush1.bf16.msra.mxu0 %v214
  %234 = vmatprep.subr.bf16.mxu0 0
  %235 = vmatpush1.bf16.msra.mxu0 %v213
  %236 = vmatprep.subr.bf16.mxu0 0
  %237 = vmatpush2.bf16.msra.mxu0 0
  %238 = vmatprep.subr.bf16.mxu0 0
  %239 = vmatpush2.bf16.msra.mxu0 0
  %240 = vmatprep.subr.bf16.mxu0 0
  %241 = vmatpush2.bf16.msra.mxu0 0
  %242 = vmatprep.subr.bf16.mxu0 0
  %243 = vmatpush2.bf16.msra.mxu0 0
  %244 = vmatprep.subr.bf16.mxu0 0
  %245 = vmatpush2.bf16.msra.mxu0 0
  %246 = vmatprep.subr.bf16.mxu0 0
  %247 = vmatpush2.bf16.msra.mxu0 0
  %248 = vmatprep.subr.bf16.mxu0 0
  %249 = vmatpush2.bf16.msra.mxu0 0
  %250 = vmatprep.subr.bf16.mxu0 0
  %251 = vmatpush2.bf16.msra.mxu0 0
  %252 = vmatprep.mubr.bf16.mxu0 0
  %253 = vmatmul.mubr.bf16.gmra.mxu0 %v218
  %v254 = vpop.f32.mrf.mxu0
  %v255 = vadd.f32 0.0, %v254
  %v256 = vpop.f32.mrf.mxu0
  %v257 = vpop.f32.mrf.mxu0
  %v258 = vadd.f32 0.0, %v257
  %v259 = vpop.f32.mrf.mxu0
  %260 = vdwg.mxu0
  %v261 = vlaneseq
  %v262 = vshrl.u32 %v261, 7
  %v263 = vsub.s32 0, %v262
  %v264 = vrot.slane %v201, %v263
  %v265 = vadd.f32 %v255, %v264
  %v266 = vmul.f32 %v265, 0.5
  %v267 = vsel %vm16, %v265, %v266
  %v268 = vtanh.pop %v267
  %v269 = vmul.f32 %v268, 0.5
  %v270 = vadd.f32 %v269, 0.5
  %v271 = vsel %vm16, %v268, %v270
  %273 = vrot.lane.b32.xlu0 %v271, 64
  %v274 = vpop.permute.xlu0 %273
  %v276 = vmul.f32 %v271, %v274
  %v277 = vtanh.pop %v276
  %279 = vrot.lane.b32.xlu0 %v277, 96
  %v280 = vpop.permute.xlu0 %279
  %v282 = vmul.f32 %v271, %v280
  %v283 = vpack.c.bf16 %v282, %v282
  %285 = vrot.lane.b32.xlu0 %v283, 32
  %v286 = vpop.permute.xlu0 %285
  %v291 = vunpack.c.l.b16 %v196
  %v292 = vunpack.c.l.b16 %v197
  %v293 = vunpack.c.l.b16 %v198
  %v294 = vunpack.c.l.b16 %v199
  %v295 = vpack.c.b16 %v292, %v291
  %v296 = vpack.c.b16 %v294, %v293
  %v300 = vsel %vm118, %v286, 0
  %302 = vmatprep.subr.bf16.mxu0 0
  %303 = vmatpush1.bf16.msra.mxu0 0
  %304 = vmatprep.subr.bf16.mxu0 0
  %305 = vmatpush1.bf16.msra.mxu0 0
  %306 = vmatprep.subr.bf16.mxu0 0
  %307 = vmatpush1.bf16.msra.mxu0 0
  %308 = vmatprep.subr.bf16.mxu0 0
  %309 = vmatpush1.bf16.msra.mxu0 0
  %310 = vmatprep.subr.bf16.mxu0 0
  %311 = vmatpush1.bf16.msra.mxu0 0
  %312 = vmatprep.subr.bf16.mxu0 0
  %313 = vmatpush1.bf16.msra.mxu0 0
  %314 = vmatprep.subr.bf16.mxu0 0
  %315 = vmatpush1.bf16.msra.mxu0 %v296
  %316 = vmatprep.subr.bf16.mxu0 0
  %317 = vmatpush1.bf16.msra.mxu0 %v295
  %318 = vmatprep.subr.bf16.mxu0 0
  %319 = vmatpush2.bf16.msra.mxu0 0
  %320 = vmatprep.subr.bf16.mxu0 0
  %321 = vmatpush2.bf16.msra.mxu0 0
  %322 = vmatprep.subr.bf16.mxu0 0
  %323 = vmatpush2.bf16.msra.mxu0 0
  %324 = vmatprep.subr.bf16.mxu0 0
  %325 = vmatpush2.bf16.msra.mxu0 0
  %326 = vmatprep.subr.bf16.mxu0 0
  %327 = vmatpush2.bf16.msra.mxu0 0
  %328 = vmatprep.subr.bf16.mxu0 0
  %329 = vmatpush2.bf16.msra.mxu0 0
  %330 = vmatprep.subr.bf16.mxu0 0
  %331 = vmatpush2.bf16.msra.mxu0 0
  %332 = vmatprep.subr.bf16.mxu0 0
  %333 = vmatpush2.bf16.msra.mxu0 0
  %334 = vmatprep.mubr.bf16.mxu0 0
  %335 = vmatmul.mubr.bf16.gmra.mxu0 %v300
  %v336 = vpop.f32.mrf.mxu0
  %v337 = vadd.f32 0.0, %v336
  %v338 = vpop.f32.mrf.mxu0
  %v339 = vpop.f32.mrf.mxu0
  %v340 = vpop.f32.mrf.mxu0
  %341 = vdwg.mxu0
  %v342 = vadd.f32 %v258, %v337
  %v343 = vadd.f32 %v342, %v264
  %v344 = vmul.f32 %v343, 0.5
  %v345 = vsel %vm16, %v343, %v344
  %v346 = vtanh.pop %v345
  %v347 = vmul.f32 %v346, 0.5
  %v348 = vadd.f32 %v347, 0.5
  %v349 = vsel %vm16, %v346, %v348
  %351 = vrot.lane.b32.xlu0 %v276, 32
  %v352 = vpop.permute.xlu0 %351
  %v354 = vmul.f32 %v349, %v352
  %356 = vrot.lane.b32.xlu0 %v349, 64
  %v357 = vpop.permute.xlu0 %356
  %v359 = vmul.f32 %v349, %v357
  %361 = vrot.lane.b32.xlu0 %v359, 32
  %v362 = vpop.permute.xlu0 %361
  %v364 = vadd.f32 %v354, %v362
  %v365 = vtanh.pop %v364
  %367 = vrot.lane.b32.xlu0 %v365, 64
  %v368 = vpop.permute.xlu0 %367
  %v370 = vmul.f32 %v349, %v368
  %v371 = vld [vmem:[%s1 + $0x48] sm:$0x1]
  %v372 = vunpack.c.l.bf16 %v371
  %v373 = vlaneseq
  %v374 = vshrl.u32 %v373, 7
  %v375 = vsub.s32 0, %v374
  %v376 = vrot.slane %v372, %v375
  %378 = vrot.lane.b32.xlu0 %v376, 96
  %v379 = vpop.permute.xlu0 %378
  %v381 = vmul.f32 %v370, %v379
  %383 = vrot.lane.b32.xlu0 %v381, 32
  %v384 = vpop.permute.xlu0 %383
  %v386 = vsel %vm118, %v384, 0.0
  %387 = vadd.xlane.f32.xlu0 %v386
  %v388 = vpop.xlane.xlu0 %387
  %v389 = vlaneseq
  %v390 = vshrl.u32 %v389, 7
  %v391 = vsub.s32 1, %v390
  %v392 = vrot.slane %v372, %v391
  %v393 = vadd.f32 %v388, %v392
  %vm394 = vcmask 7168
  %395 = vst.msk [vmem:[%s2] sm:$0xff] %vm394, %v393
  // Predicated region
  $region10: #{forward.1} parent=0 // pred_check
    _
  $region11: #{forward.1} parent=0 // pred_check_branch
    %397 = sbr.rel (0) target = $region13
  $region12: #{forward.1} parent=0 // pred_region
    _
  $region13: #{forward.1} parent=0 // pred_fallthru
    _
  // Predicated region
  $region14: #{forward.1} parent=0 // pred_check
    _
  $region15: #{forward.1} parent=0 // pred_check_branch
    %399 = sbr.rel (0) target = $region17
  $region16: #{forward.1} parent=0 // pred_region
    _
  $region17: #{forward.1} parent=0 // pred_fallthru
    _

</llo_original>
